<compile_context>
chip_gen: v5e
topology: v5e:2x2
jax: 0.10.0
libtpu: 0.0.40
codegen_flags: <defaults>
</compile_context>

<pallas_src>
import jax
import jax.numpy as jnp
from jax import lax
from jax.experimental import pallas as pl
from jax.experimental.pallas import tpu as pltpu

N_ATOMS = 16       # total atoms across the batch
HIDDEN = 32        # hidden feature width
N_MOL = 2          # number of molecules (graphs) in the batch
N_ELEMENTS = 10    # embedding table size
EMB_PAD = 16       # one-hot lanes [0, 16) of the fused LHS
POS_LANE = 16      # pos occupies lanes [16, 19)
BIAS_LANE = 24     # constant-1 column (folds b1)
Z_LANE = 25        # z stored as an exact small float (multiplies a zero slab row)
K1 = 32            # fused layer-1 contraction width (lane count of the LHS)
B_PAD = 8          # molecules padded to 8 sublanes (one f32 vreg of output)
OUT_LANES = 128    # lane-dense output width
SLAB_ROWS = 104    # packed parameter slab rows (multiple of 8)

# packed-slab row offsets
_W1F_OFF = 0       # [0:32)   fused layer-1 weight: [emb@w1 ; 0 ; wpos@w1 ; 0 ; b1 ; 0]
_W2_OFF = 32       # [32:64)  w2
_WOUT_OFF = 64     # [64:96)  lane 0 holds wout * std as a column
_B2_ROW = 96       # b2 row
_BOUT_ROW = 97     # lane 0 = b_out * std
_MEAN_ROW = 98     # lane 0 = mean

assert N_ELEMENTS <= EMB_PAD, "element vocabulary must fit the one-hot lanes"
assert POS_LANE + 3 <= BIAS_LANE < Z_LANE < K1


def unified_energy_kernel(feat_ref, batch_ref, w_ref, out_ref):
    # --- fused layer-1 LHS built in-register ---------------------------------
    # feat lanes: [0:16)=0 (one-hot goes here), [16:19)=pos, 24=1.0, 25=float(z).
    zi = feat_ref[:, Z_LANE:Z_LANE + 1].astype(jnp.int32)                 # (N, 1)
    onehot = (lax.broadcasted_iota(jnp.int32, (N_ATOMS, K1), 1)
              == zi).astype(jnp.float32)                                  # (N, 32)
    lhs = onehot + feat_ref[...]        # z<16 so the one-hot never touches lanes>=16

    # --- static slices of the packed parameter slab --------------------------
    w1f = w_ref[_W1F_OFF:_W1F_OFF + K1, :]               # (32, H) fused L1 (b1 folded)
    w2 = w_ref[_W2_OFF:_W2_OFF + HIDDEN, :]              # (H,  H)
    wout_col = w_ref[_WOUT_OFF:_WOUT_OFF + HIDDEN, 0:1]  # (H,  1)  = wout * std
    b2 = w_ref[_B2_ROW:_B2_ROW + 1, :]                   # (1,  H)
    b_out_s = w_ref[_BOUT_ROW:_BOUT_ROW + 1, 0:1]        # (1,  1)  = b_out * std
    mean = w_ref[_MEAN_ROW:_MEAN_ROW + 1, 0:1]           # (1,  1)

    # --- representation + MLP (one matmul per layer) --------------------------
    x1 = jax.nn.gelu(jnp.dot(lhs, w1f, preferred_element_type=jnp.float32))   # (N, H)
    x2 = jax.nn.gelu(jnp.dot(x1, w2, preferred_element_type=jnp.float32) + b2)

    # --- per-atom energy (std pre-folded into wout/b_out) ---------------------
    e_atom = jnp.dot(x2, wout_col, preferred_element_type=jnp.float32) + b_out_s  # (N,1)

    # --- scatter(pred_energy, batch, reduce='add'): MXU matmul ----------------
    sT = (lax.broadcasted_iota(jnp.int32, (B_PAD, N_ATOMS), 0)
          == batch_ref[...]).astype(jnp.float32)                                 # (B_PAD, N)
    pred = jnp.dot(sT, e_atom, preferred_element_type=jnp.float32) + mean        # (B_PAD, 1)

    # --- one full unmasked (8, 128) vreg store --------------------------------
    out_ref[...] = jnp.broadcast_to(pred, (B_PAD, OUT_LANES))


def pack_params(params):
    """One-time parameter packing: fold w1, b1 and std; build the single VMEM slab."""
    emb_w1 = params['emb'] @ params['w1']          # (N_ELEMENTS, H)
    wpos_w1 = params['wpos'] @ params['w1']        # (3, H)
    w1f = jnp.zeros((K1, HIDDEN), jnp.float32)
    w1f = w1f.at[:N_ELEMENTS].set(emb_w1)
    w1f = w1f.at[POS_LANE:POS_LANE + 3].set(wpos_w1)
    w1f = w1f.at[BIAS_LANE].set(params['b1'][0])   # bias column folds b1

    slab = jnp.zeros((SLAB_ROWS, HIDDEN), jnp.float32)
    slab = slab.at[_W1F_OFF:_W1F_OFF + K1].set(w1f)
    slab = slab.at[_W2_OFF:_W2_OFF + HIDDEN].set(params['w2'])
    slab = slab.at[_WOUT_OFF:_WOUT_OFF + HIDDEN, 0].set(params['wout'][0] * params['std'])
    slab = slab.at[_B2_ROW].set(params['b2'][0])
    slab = slab.at[_BOUT_ROW, 0].set(params['b_out'] * params['std'])
    slab = slab.at[_MEAN_ROW, 0].set(params['mean'])
    return slab


@jax.jit
def unified_model_forward(w_slab, z, pos, batch):
    """z: (N,) int32, pos: (N,3) f32, batch: (N,) int32 -> (N_MOL,) pred_energy."""
    n = z.shape[0]
    # Fused-LHS tail: pos / bias-1 / z-as-float pre-placed; one-hot added in-kernel.
    atom_feat = jnp.concatenate(
        [jnp.zeros((n, EMB_PAD), jnp.float32),
         pos.astype(jnp.float32),                                   # lanes 16:19
         jnp.zeros((n, BIAS_LANE - EMB_PAD - 3), jnp.float32),
         jnp.ones((n, 1), jnp.float32),                             # lane 24 (bias)
         z.astype(jnp.float32).reshape(n, 1),                       # lane 25 (exact)
         jnp.zeros((n, K1 - Z_LANE - 1), jnp.float32)], axis=1)     # (N, 32)
    batch_row = batch.astype(jnp.int32).reshape(1, n)

    out = pl.pallas_call(
        unified_energy_kernel,
        out_shape=jax.ShapeDtypeStruct((B_PAD, OUT_LANES), jnp.float32),
        in_specs=[pl.BlockSpec(memory_space=pltpu.MemorySpace.VMEM)] * 3,
        out_specs=pl.BlockSpec(memory_space=pltpu.MemorySpace.VMEM),
    )(atom_feat, batch_row, w_slab)
    return out[:N_MOL, 0]                                           # (N_MOL,)


def reference_forward(params, z, pos, batch):
    """Pure-JAX reference mirroring the PyTorch semantics (unfolded math)."""
    h0 = params['emb'][z] + pos @ params['wpos']
    x1 = jax.nn.gelu(h0 @ params['w1'] + params['b1'])
    x2 = jax.nn.gelu(x1 @ params['w2'] + params['b2'])
    e_atom = jnp.sum(x2 * params['wout'], axis=-1) + params['b_out']
    pred = jax.ops.segment_sum(e_atom, batch, num_segments=N_MOL)    # scatter add
    return pred * params['std'] + params['mean']


if __name__ == "__main__":
    key = jax.random.PRNGKey(0)
    k = jax.random.split(key, 8)
    params = {
        'emb':  jax.random.normal(k[0], (N_ELEMENTS, HIDDEN), jnp.float32) * 0.1,
        'wpos': jax.random.normal(k[1], (3, HIDDEN), jnp.float32) * 0.1,
        'w1':   jax.random.normal(k[2], (HIDDEN, HIDDEN), jnp.float32) * 0.1,
        'b1':   jnp.zeros((1, HIDDEN), jnp.float32),
        'w2':   jax.random.normal(k[3], (HIDDEN, HIDDEN), jnp.float32) * 0.1,
        'b2':   jnp.zeros((1, HIDDEN), jnp.float32),
        'wout': jax.random.normal(k[4], (1, HIDDEN), jnp.float32) * 0.1,
        'b_out': 0.05,
        'mean': -3.0,   # registered buffer `mean`
        'std':  2.0,    # registered buffer `std`
    }

    z = jax.random.randint(k[5], (N_ATOMS,), 1, N_ELEMENTS).astype(jnp.int32)
    pos = jax.random.normal(k[6], (N_ATOMS, 3), jnp.float32)
    batch = jnp.repeat(jnp.arange(N_MOL, dtype=jnp.int32), N_ATOMS // N_MOL)

    w_slab = pack_params(params)   # one-time param prep (w1/b1/std folded + packed)

    pred_energy = jax.block_until_ready(
        unified_model_forward(w_slab, z, pos, batch))
    ref = reference_forward(params, z, pos, batch)

    assert pred_energy.shape == (N_MOL,)
    assert jnp.allclose(pred_energy, ref, atol=1e-4, rtol=1e-4), (pred_energy, ref)
    print("KERNEL_OK")
</pallas_src>

<mosaic_0001>
module attributes {stable_mosaic.version = 11 : i64} {
  func.func @unified_energy_kernel(%arg0: memref<16x32xf32, #tpu.memory_space<vmem>>, %arg1: memref<1x16xi32, #tpu.memory_space<vmem>>, %arg2: memref<104x32xf32, #tpu.memory_space<vmem>>, %arg3: memref<8x128xf32, #tpu.memory_space<vmem>>) attributes {dimension_semantics = [], scalar_prefetch = 0 : i64, scratch_operands = 0 : i64, tpu.core_type = #tpu.core_type<tc>} {
    %c0 = arith.constant 0 : index
    %c25 = arith.constant 25 : index
    %0 = vector.load %arg0[%c0, %c25] : memref<16x32xf32, #tpu.memory_space<vmem>>, vector<16x1xf32>
    %1 = arith.fptosi %0 : vector<16x1xf32> to vector<16x1xi32>
    %2 = tpu.iota {dimensions = array<i32: 1>} : vector<16x32xi32>
    %3 = vector.broadcast %1 : vector<16x1xi32> to vector<16x32xi32>
    %4 = arith.cmpi eq, %2, %3 : vector<16x32xi32>
    %5 = arith.extui %4 : vector<16x32xi1> to vector<16x32xi32>
    %6 = arith.sitofp %5 : vector<16x32xi32> to vector<16x32xf32>
    %c0_0 = arith.constant 0 : index
    %c0_1 = arith.constant 0 : index
    %7 = vector.load %arg0[%c0_0, %c0_1] : memref<16x32xf32, #tpu.memory_space<vmem>>, vector<16x32xf32>
    %8 = arith.addf %6, %7 : vector<16x32xf32>
    %c0_2 = arith.constant 0 : index
    %c0_3 = arith.constant 0 : index
    %9 = vector.load %arg2[%c0_2, %c0_3] : memref<104x32xf32, #tpu.memory_space<vmem>>, vector<32x32xf32>
    %c32 = arith.constant 32 : index
    %c0_4 = arith.constant 0 : index
    %10 = vector.load %arg2[%c32, %c0_4] : memref<104x32xf32, #tpu.memory_space<vmem>>, vector<32x32xf32>
    %c64 = arith.constant 64 : index
    %c0_5 = arith.constant 0 : index
    %11 = vector.load %arg2[%c64, %c0_5] : memref<104x32xf32, #tpu.memory_space<vmem>>, vector<32x1xf32>
    %c96 = arith.constant 96 : index
    %c0_6 = arith.constant 0 : index
    %12 = vector.load %arg2[%c96, %c0_6] : memref<104x32xf32, #tpu.memory_space<vmem>>, vector<1x32xf32>
    %c97 = arith.constant 97 : index
    %c0_7 = arith.constant 0 : index
    %13 = vector.load %arg2[%c97, %c0_7] : memref<104x32xf32, #tpu.memory_space<vmem>>, vector<1x1xf32>
    %c98 = arith.constant 98 : index
    %c0_8 = arith.constant 0 : index
    %14 = vector.load %arg2[%c98, %c0_8] : memref<104x32xf32, #tpu.memory_space<vmem>>, vector<1x1xf32>
    %cst = arith.constant dense<0.000000e+00> : vector<16x32xf32>
    %15 = tpu.matmul %8, %9, %cst {dimension_numbers = #tpu.dot_dimension_numbers<[1], [0], [0], [1], [0, 0, 1, 1], [], []>} : vector<16x32xf32>, vector<32x32xf32>, vector<16x32xf32> -> vector<16x32xf32>
    %16 = arith.mulf %15, %15 : vector<16x32xf32>
    %17 = arith.mulf %15, %16 : vector<16x32xf32>
    %cst_9 = arith.constant 4.471500e-02 : f32
    %18 = vector.broadcast %cst_9 : f32 to vector<16x32xf32>
    %19 = arith.mulf %18, %17 : vector<16x32xf32>
    %20 = arith.addf %15, %19 : vector<16x32xf32>
    %cst_10 = arith.constant 0.797884583 : f32
    %21 = vector.broadcast %cst_10 : f32 to vector<16x32xf32>
    %22 = arith.mulf %21, %20 : vector<16x32xf32>
    %23 = math.tanh %22 : vector<16x32xf32>
    %cst_11 = arith.constant 1.000000e+00 : f32
    %24 = vector.broadcast %cst_11 : f32 to vector<16x32xf32>
    %25 = arith.addf %24, %23 : vector<16x32xf32>
    %cst_12 = arith.constant 5.000000e-01 : f32
    %26 = vector.broadcast %cst_12 : f32 to vector<16x32xf32>
    %27 = arith.mulf %26, %25 : vector<16x32xf32>
    %28 = arith.mulf %15, %27 : vector<16x32xf32>
    %cst_13 = arith.constant dense<0.000000e+00> : vector<16x32xf32>
    %29 = tpu.matmul %28, %10, %cst_13 {dimension_numbers = #tpu.dot_dimension_numbers<[1], [0], [0], [1], [0, 0, 1, 1], [], []>} : vector<16x32xf32>, vector<32x32xf32>, vector<16x32xf32> -> vector<16x32xf32>
    %30 = vector.broadcast %12 : vector<1x32xf32> to vector<16x32xf32>
    %31 = arith.addf %29, %30 : vector<16x32xf32>
    %32 = arith.mulf %31, %31 : vector<16x32xf32>
    %33 = arith.mulf %31, %32 : vector<16x32xf32>
    %cst_14 = arith.constant 4.471500e-02 : f32
    %34 = vector.broadcast %cst_14 : f32 to vector<16x32xf32>
    %35 = arith.mulf %34, %33 : vector<16x32xf32>
    %36 = arith.addf %31, %35 : vector<16x32xf32>
    %cst_15 = arith.constant 0.797884583 : f32
    %37 = vector.broadcast %cst_15 : f32 to vector<16x32xf32>
    %38 = arith.mulf %37, %36 : vector<16x32xf32>
    %39 = math.tanh %38 : vector<16x32xf32>
    %cst_16 = arith.constant 1.000000e+00 : f32
    %40 = vector.broadcast %cst_16 : f32 to vector<16x32xf32>
    %41 = arith.addf %40, %39 : vector<16x32xf32>
    %cst_17 = arith.constant 5.000000e-01 : f32
    %42 = vector.broadcast %cst_17 : f32 to vector<16x32xf32>
    %43 = arith.mulf %42, %41 : vector<16x32xf32>
    %44 = arith.mulf %31, %43 : vector<16x32xf32>
    %cst_18 = arith.constant dense<0.000000e+00> : vector<16x1xf32>
    %45 = tpu.matmul %44, %11, %cst_18 {dimension_numbers = #tpu.dot_dimension_numbers<[1], [0], [0], [1], [0, 0, 1, 1], [], []>} : vector<16x32xf32>, vector<32x1xf32>, vector<16x1xf32> -> vector<16x1xf32>
    %46 = vector.broadcast %13 : vector<1x1xf32> to vector<16x1xf32>
    %47 = arith.addf %45, %46 : vector<16x1xf32>
    %48 = tpu.iota {dimensions = array<i32: 0>} : vector<8x16xi32>
    %c0_19 = arith.constant 0 : index
    %c0_20 = arith.constant 0 : index
    %49 = vector.load %arg1[%c0_19, %c0_20] : memref<1x16xi32, #tpu.memory_space<vmem>>, vector<1x16xi32>
    %50 = vector.broadcast %49 : vector<1x16xi32> to vector<8x16xi32>
    %51 = arith.cmpi eq, %48, %50 : vector<8x16xi32>
    %52 = arith.extui %51 : vector<8x16xi1> to vector<8x16xi32>
    %53 = arith.sitofp %52 : vector<8x16xi32> to vector<8x16xf32>
    %cst_21 = arith.constant dense<0.000000e+00> : vector<8x1xf32>
    %54 = tpu.matmul %53, %47, %cst_21 {dimension_numbers = #tpu.dot_dimension_numbers<[1], [0], [0], [1], [0, 0, 1, 1], [], []>} : vector<8x16xf32>, vector<16x1xf32>, vector<8x1xf32> -> vector<8x1xf32>
    %55 = vector.broadcast %14 : vector<1x1xf32> to vector<8x1xf32>
    %56 = arith.addf %54, %55 : vector<8x1xf32>
    %57 = vector.shape_cast %56 : vector<8x1xf32> to vector<8x1xf32>
    %58 = vector.broadcast %57 : vector<8x1xf32> to vector<8x128xf32>
    %c0_22 = arith.constant 0 : index
    %c0_23 = arith.constant 0 : index
    %59 = vector.load %arg3[%c0_22, %c0_23] : memref<8x128xf32, #tpu.memory_space<vmem>>, vector<8x128xf32>
    tpu.vector_store %arg3[%c0_22, %c0_23], %58 {strides = array<i32>} : memref<8x128xf32, #tpu.memory_space<vmem>>, vector<8x128xf32>,
    return
  }
}

</mosaic_0001>

<llo_original>
// kernel: unified_model_forward.1
$region0: #{unified_model_forward.1}
  #allocation0 [shape = 'u32[]', space=smem, size = 0x4, offset = 0x4, fixed_abs, tag = 'smem constant byte address 0x4 - core index']
  #allocation1 [shape = 'u32[72,128]{1,0:T(1,128)}', space=vmem, size = 0x9000, scoped, tag = 'internal scratch']
  %s0 = inlined_call_operand.vmem [shape: f32[16,32], index: 0, kind: input, shape index: {}]
  %s1 = inlined_call_operand.vmem [shape: s32[1,16], index: 1, kind: input, shape index: {}]
  %s2 = inlined_call_operand.vmem [shape: f32[104,32], index: 2, kind: input, shape index: {}]
  %s3 = inlined_call_operand.vmem [shape: f32[8,128], index: 3, kind: output, shape index: {}]
  %s4 = sld [smem:[#allocation0]]
  $region22: #{unified_model_forward.1} parent=0
    _
  %s6 = ssub.s32 1, %s4
  %s7 = scalar_select 0, %s6, %s4
  // Predicated region
  $region2: #{unified_model_forward.1} parent=0 // pred_check
    _
  $region3: #{unified_model_forward.1} parent=0 // pred_check_branch
    %9 = sbr.rel (0) target = $region5
  $region4: #{unified_model_forward.1} parent=0 // pred_region
    _
  $region5: #{unified_model_forward.1} parent=0 // pred_fallthru
    _
  // Predicated region
  $region6: #{unified_model_forward.1} parent=0 // pred_check
    _
  $region7: #{unified_model_forward.1} parent=0 // pred_check_branch
    %11 = sbr.rel (0) target = $region9
  $region8: #{unified_model_forward.1} parent=0 // pred_region
    _
  $region9: #{unified_model_forward.1} parent=0 // pred_fallthru
    _
  // Predicated region
  $region10: #{unified_model_forward.1} parent=0 // pred_check
    _
  $region11: #{unified_model_forward.1} parent=0 // pred_check_branch
    %13 = sbr.rel (0) target = $region13
  $region12: #{unified_model_forward.1} parent=0 // pred_region
    _
  $region13: #{unified_model_forward.1} parent=0 // pred_fallthru
    _
  %v14 = vld [vmem:[%s0] sm:$0xff]
  %v15 = vld [vmem:[%s0 + $0x8] sm:$0xff]
  %v16 = vcvt.f32.s32.to.zero.pseudo %v14
  %v17 = vcvt.f32.s32.to.zero.pseudo %v15
  %v18 = vlaneseq
  %v19 = vand.u32 %v18, 127
  %20 = vset.pattern.permute.xlu0 25
  %21 = vperm.xlu0 %20, %v16
  %v22 = vpop.permute.xlu0 %21
  %23 = vset.pattern.permute.xlu0 25
  %24 = vperm.xlu0 %23, %v17
  %v25 = vpop.permute.xlu0 %24
  %vm26 = vcmp.eq.s32.totalorder %v19, %v22
  %vm27 = vcmp.eq.s32.totalorder %v19, %v25
  %v28 = vsel %vm26, 1, 0
  %v29 = vsel %vm27, 1, 0
  %v30 = vcvt.s32.f32 %v28
  %v31 = vcvt.s32.f32 %v29
  %v32 = vadd.f32 %v30, %v14
  %v33 = vadd.f32 %v31, %v15
  %v34 = vld [vmem:[%s2] sm:$0xff]
  %v35 = vld [vmem:[%s2 + $0x8] sm:$0xff]
  %v36 = vld [vmem:[%s2 + $0x10] sm:$0xff]
  %v37 = vld [vmem:[%s2 + $0x18] sm:$0xff]
  %v38 = vld [vmem:[%s2 + $0x20] sm:$0xff]
  %v39 = vld [vmem:[%s2 + $0x28] sm:$0xff]
  %v40 = vld [vmem:[%s2 + $0x30] sm:$0xff]
  %v41 = vld [vmem:[%s2 + $0x38] sm:$0xff]
  %v42 = vld [vmem:[%s2 + $0x40] sm:$0xff]
  %v43 = vld [vmem:[%s2 + $0x48] sm:$0xff]
  %v44 = vld [vmem:[%s2 + $0x50] sm:$0xff]
  %v45 = vld [vmem:[%s2 + $0x58] sm:$0xff]
  %v46 = vld [vmem:[%s2 + $0x60] sm:$0x1]
  %v47 = vld [vmem:[%s2 + $0x61] sm:$0x1]
  %v48 = vld [vmem:[%s2 + $0x62] sm:$0x1]
  %vm49 = vcmask 261120
  %v51 = vsel %vm49, %v32, 0
  %v54 = vsel %vm49, %v33, 0
  %56 = vmatpush.msra.mxu0 0.0
  %57 = vmatpush.msra.mxu0 0.0
  %58 = vmatpush.msra.mxu0 0.0
  %59 = vmatpush.msra.mxu0 0.0
  %60 = vmatpush.msra.mxu0 0.0
  %61 = vmatpush.msra.mxu0 0.0
  %62 = vmatpush.msra.mxu0 0.0
  %63 = vmatpush.msra.mxu0 0.0
  %64 = vmatpush.msra.mxu0 0.0
  %65 = vmatpush.msra.mxu0 0.0
  %66 = vmatpush.msra.mxu0 0.0
  %67 = vmatpush.msra.mxu0 0.0
  %68 = vmatpush.msra.mxu0 %v37
  %69 = vmatpush.msra.mxu0 %v36
  %70 = vmatpush.msra.mxu0 %v35
  %71 = vmatpush.msra.mxu0 %v34
  %72 = vmatmul.f32.gmra.mxu0 %v51
  %v73 = vpop.f32.mrf.mxu0
  %v74 = vadd.f32 0.0, %v73
  %75 = vmatmul.f32.gmra.mxu0 %v54
  %v76 = vpop.f32.mrf.mxu0
  %v77 = vadd.f32 0.0, %v76
  %78 = vdwg.mxu0
  %v79 = vmul.f32 %v74, %v74
  %v80 = vmul.f32 %v77, %v77
  %v81 = vmul.f32 %v74, %v79
  %v82 = vmul.f32 %v77, %v80
  %v83 = vmul.f32 %v81, 0.044715
  %v84 = vmul.f32 %v82, 0.044715
  %v85 = vadd.f32 %v74, %v83
  %v86 = vadd.f32 %v77, %v84
  %v87 = vmul.f32 %v85, 0.7978846
  %v88 = vmul.f32 %v86, 0.7978846
  %v89 = vtanh.pop %v87
  %v90 = vtanh.pop %v88
  %v91 = vadd.f32 %v89, 1.0
  %v92 = vadd.f32 %v90, 1.0
  %v93 = vmul.f32 %v91, 0.5
  %v94 = vmul.f32 %v92, 0.5
  %v95 = vmul.f32 %v74, %v93
  %v96 = vmul.f32 %v77, %v94
  %v97 = vperm.slane %v46, 0
  %v99 = vsel %vm49, %v95, 0
  %v102 = vsel %vm49, %v96, 0
  %104 = vmatpush.msra.mxu0 0.0
  %105 = vmatpush.msra.mxu0 0.0
  %106 = vmatpush.msra.mxu0 0.0
  %107 = vmatpush.msra.mxu0 0.0
  %108 = vmatpush.msra.mxu0 0.0
  %109 = vmatpush.msra.mxu0 0.0
  %110 = vmatpush.msra.mxu0 0.0
  %111 = vmatpush.msra.mxu0 0.0
  %112 = vmatpush.msra.mxu0 0.0
  %113 = vmatpush.msra.mxu0 0.0
  %114 = vmatpush.msra.mxu0 0.0
  %115 = vmatpush.msra.mxu0 0.0
  %116 = vmatpush.msra.mxu0 %v41
  %117 = vmatpush.msra.mxu0 %v40
  %118 = vmatpush.msra.mxu0 %v39
  %119 = vmatpush.msra.mxu0 %v38
  %120 = vmatmul.f32.gmra.mxu0 %v99
  %v121 = vpop.f32.mrf.mxu0
  %v122 = vadd.f32 %v97, %v121
  %123 = vmatmul.f32.gmra.mxu0 %v102
  %v124 = vpop.f32.mrf.mxu0
  %v125 = vadd.f32 %v97, %v124
  %126 = vdwg.mxu0
  %v127 = vmul.f32 %v122, %v122
  %v128 = vmul.f32 %v125, %v125
  %v129 = vmul.f32 %v122, %v127
  %v130 = vmul.f32 %v125, %v128
  %v131 = vmul.f32 %v129, 0.044715
  %v132 = vmul.f32 %v130, 0.044715
  %v133 = vadd.f32 %v122, %v131
  %v134 = vadd.f32 %v125, %v132
  %v135 = vmul.f32 %v133, 0.7978846
  %v136 = vmul.f32 %v134, 0.7978846
  %v137 = vtanh.pop %v135
  %v138 = vtanh.pop %v136
  %v139 = vadd.f32 %v137, 1.0
  %v140 = vadd.f32 %v138, 1.0
  %v141 = vmul.f32 %v139, 0.5
  %v142 = vmul.f32 %v140, 0.5
  %v143 = vmul.f32 %v122, %v141
  %v144 = vmul.f32 %v125, %v142
  %v145 = vperm.slane %v47, 0
  %v147 = vsel %vm49, %v143, 0
  %v150 = vsel %vm49, %v144, 0
  %152 = vmatpush.msra.mxu0 0.0
  %153 = vmatpush.msra.mxu0 0.0
  %154 = vmatpush.msra.mxu0 0.0
  %155 = vmatpush.msra.mxu0 0.0
  %156 = vmatpush.msra.mxu0 0.0
  %157 = vmatpush.msra.mxu0 0.0
  %158 = vmatpush.msra.mxu0 0.0
  %159 = vmatpush.msra.mxu0 0.0
  %160 = vmatpush.msra.mxu0 0.0
  %161 = vmatpush.msra.mxu0 0.0
  %162 = vmatpush.msra.mxu0 0.0
  %163 = vmatpush.msra.mxu0 0.0
  %164 = vmatpush.msra.mxu0 %v45
  %165 = vmatpush.msra.mxu0 %v44
  %166 = vmatpush.msra.mxu0 %v43
  %167 = vmatpush.msra.mxu0 %v42
  %168 = vmatmul.f32.gmra.mxu0 %v147
  %v169 = vpop.f32.mrf.mxu0
  %v170 = vadd.f32 %v145, %v169
  %171 = vmatmul.f32.gmra.mxu0 %v150
  %v172 = vpop.f32.mrf.mxu0
  %v173 = vadd.f32 %v145, %v172
  %174 = vdwg.mxu0
  %v175 = vlaneseq
  %v176 = vshrl.u32 %v175, 7
  %v177 = vld [vmem:[%s1] sm:$0x1]
  %v178 = vperm.slane %v177, 0
  %vm179 = vcmp.eq.s32.totalorder %v176, %v178
  %v180 = vsel %vm179, 1, 0
  %v181 = vcvt.s32.f32 %v180
  %v182 = vperm.slane %v48, 0
  %vm183 = vcmask 130048
  %v185 = vsel %vm183, %v181, 0
  %187 = vmatpush.msra.mxu0 0.0
  %188 = vmatpush.msra.mxu0 0.0
  %189 = vmatpush.msra.mxu0 0.0
  %190 = vmatpush.msra.mxu0 0.0
  %191 = vmatpush.msra.mxu0 0.0
  %192 = vmatpush.msra.mxu0 0.0
  %193 = vmatpush.msra.mxu0 0.0
  %194 = vmatpush.msra.mxu0 0.0
  %195 = vmatpush.msra.mxu0 0.0
  %196 = vmatpush.msra.mxu0 0.0
  %197 = vmatpush.msra.mxu0 0.0
  %198 = vmatpush.msra.mxu0 0.0
  %199 = vmatpush.msra.mxu0 0.0
  %200 = vmatpush.msra.mxu0 0.0
  %201 = vmatpush.msra.mxu0 %v173
  %202 = vmatpush.msra.mxu0 %v170
  %203 = vmatmul.f32.gmra.mxu0 %v185
  %v204 = vpop.f32.mrf.mxu0
  %v205 = vadd.f32 %v182, %v204
  %206 = vdwg.mxu0
  %208 = vset.pattern.permute.xlu0 0
  %209 = vperm.xlu0 %208, %v205
  %v210 = vpop.permute.xlu0 %209
  %212 = vst [vmem:[%s3] sm:$0xff] %v210
  // Predicated region
  $region14: #{unified_model_forward.1} parent=0 // pred_check
    _
  $region15: #{unified_model_forward.1} parent=0 // pred_check_branch
    %214 = sbr.rel (0) target = $region17
  $region16: #{unified_model_forward.1} parent=0 // pred_region
    _
  $region17: #{unified_model_forward.1} parent=0 // pred_fallthru
    _
  // Predicated region
  $region18: #{unified_model_forward.1} parent=0 // pred_check
    _
  $region19: #{unified_model_forward.1} parent=0 // pred_check_branch
    %216 = sbr.rel (0) target = $region21
  $region20: #{unified_model_forward.1} parent=0 // pred_region
    _
  $region21: #{unified_model_forward.1} parent=0 // pred_fallthru
    _

</llo_original>
